<compile_context>
chip_gen: v7x
topology: tpu7x:2x2x1
jax: 0.10.0
libtpu: 0.0.40
codegen_flags: <defaults>
</compile_context>

<pallas_src>
import jax
import jax.numpy as jnp
from jax.experimental import pallas as pl
from jax.experimental.pallas import tpu as pltpu

STATE_SIZE = 128          # lane-friendly (multiple of 128)
BATCH = 256               # whole batch handled in a single grid step (BM below)
BM_MAX = 512              # max batch rows per grid step (multiple of 8)
REG_COEF = 1e-4           # unused in forward (l1_loss only)
PRUNE_PROBA = 0.2
PRUNE_EPSILON = 1e-3      # unused in forward (prune_weights only)
LN_EPS = 1e-5             # torch.nn.LayerNorm default


def transition_kernel(x_ref, w1_ref, params_ref, w2_ref, o_ref):
    # params_ref rows: 0=b1, 1=gamma, 2=beta, 3=b2 (rows 4..7 padding).
    # Each row is used exactly once below, so a single implicit sublane broadcast per row.
    p = params_ref[...]
    b1, gamma, beta, b2 = p[0:1, :], p[1:2, :], p[2:3, :], p[3:4, :]

    # fc1: x @ W1^T + b1  -- bf16 MXU operands, f32 accumulate
    x = x_ref[...].astype(jnp.bfloat16)
    h = jnp.dot(x, w1_ref[...], preferred_element_type=jnp.float32) + b1

    # LayerNorm over last dim (f32 math), elementwise affine.
    # Single-pass variance: E[h] and E[h^2] are independent cross-lane reductions, so the
    # two XLU reductions can issue concurrently instead of being serialized through `cent`.
    mean = jnp.mean(h, axis=-1, keepdims=True)
    ex2 = jnp.mean(h * h, axis=-1, keepdims=True)
    var = jnp.maximum(ex2 - mean * mean, 0.0)        # clamp guards fp cancellation
    hn = (h - mean) * jax.lax.rsqrt(var + LN_EPS) * gamma + beta

    # ReLU
    r = jnp.maximum(hn, 0.0)

    # fc2: r @ W2^T + b2
    o_ref[...] = (jnp.dot(r.astype(jnp.bfloat16), w2_ref[...],
                          preferred_element_type=jnp.float32) + b2
                  ).astype(o_ref.dtype)


def transition_forward(x, w1_t_bf16, params, w2_t_bf16, *, bm_max=BM_MAX):
    """x: (B, D) f32; w*_t_bf16: (D, D) bf16 already transposed to (in, out);
    params: (8, D) f32 with rows [b1, gamma, beta, b2, 0, 0, 0, 0].

    Callers with many small / per-timestep batches should stack them along the batch axis
    and make ONE call here: weights are VMEM-resident across grid steps, so a single long
    call amortizes launch + weight-DMA + pipeline warm-up."""
    B, D = x.shape
    # Cover the whole batch with as few grid steps as possible (usually exactly one).
    bm = min(bm_max, ((B + 7) // 8) * 8)             # multiple of 8 sublanes
    n_tiles = pl.cdiv(B, bm)
    Bp = n_tiles * bm
    if Bp != B:                                      # pad batch to a whole number of tiles
        x = jnp.pad(x, ((0, Bp - B), (0, 0)))

    out = pl.pallas_call(
        transition_kernel,
        out_shape=jax.ShapeDtypeStruct((Bp, D), jnp.float32),
        grid=(n_tiles,),
        in_specs=[
            pl.BlockSpec((bm, D), lambda i: (i, 0)),   # x tile: streamed / double-buffered
            pl.BlockSpec((D, D), lambda i: (0, 0)),    # W1^T: resident across steps
            pl.BlockSpec((8, D), lambda i: (0, 0)),    # packed biases / LN affine
            pl.BlockSpec((D, D), lambda i: (0, 0)),    # W2^T: resident across steps
        ],
        out_specs=pl.BlockSpec((bm, D), lambda i: (i, 0)),
        compiler_params=pltpu.CompilerParams(
            dimension_semantics=("parallel",)),        # only matters if B > bm_max
    )(x, w1_t_bf16, params, w2_t_bf16)

    return out[:B] if Bp != B else out


def init_params(key, state_size, prune_proba):
    """Deterministic init mirroring the PyTorch module: Linear uniform(+-1/sqrt(D)),
    LayerNorm affine (ones/zeros), then independent random pruning of every parameter."""
    ks = jax.random.split(key, 12)
    bound = 1.0 / jnp.sqrt(state_size)
    w1 = jax.random.uniform(ks[0], (state_size, state_size), jnp.float32, -bound, bound)
    b1 = jax.random.uniform(ks[1], (state_size,), jnp.float32, -bound, bound)
    gamma = jnp.ones((state_size,), jnp.float32)
    beta = jnp.zeros((state_size,), jnp.float32)
    w2 = jax.random.uniform(ks[2], (state_size, state_size), jnp.float32, -bound, bound)
    b2 = jax.random.uniform(ks[3], (state_size,), jnp.float32, -bound, bound)

    # replicate __init__ pruning: p.data[rand < prune_proba] = 0  (independent mask per param)
    def prune(p, k):
        filt = jax.random.uniform(k, p.shape, jnp.float32)
        return jnp.where(filt < prune_proba, 0.0, p)

    w1 = prune(w1, ks[4]); b1 = prune(b1, ks[5])
    gamma = prune(gamma, ks[6]); beta = prune(beta, ks[7])
    w2 = prune(w2, ks[8]); b2 = prune(b2, ks[9])
    return w1, b1, gamma, beta, w2, b2


def reference_forward_bf16(x, w1, b1, gamma, beta, w2, b2):
    """Matches the kernel's numerics: bf16 matmul operands, f32 accumulate, f32 LN."""
    h = jnp.dot(x.astype(jnp.bfloat16), w1.T.astype(jnp.bfloat16),
                preferred_element_type=jnp.float32) + b1
    mean = h.mean(-1, keepdims=True)
    var = ((h - mean) ** 2).mean(-1, keepdims=True)
    hn = (h - mean) * jax.lax.rsqrt(var + LN_EPS) * gamma + beta
    r = jnp.maximum(hn, 0.0)
    return jnp.dot(r.astype(jnp.bfloat16), w2.T.astype(jnp.bfloat16),
                   preferred_element_type=jnp.float32) + b2


def reference_forward_f32(x, w1, b1, gamma, beta, w2, b2):
    """Pure-f32 reference of the PyTorch forward (loose-tolerance sanity check)."""
    h = x @ w1.T + b1
    mean = h.mean(-1, keepdims=True)
    var = ((h - mean) ** 2).mean(-1, keepdims=True)
    hn = (h - mean) / jnp.sqrt(var + LN_EPS) * gamma + beta
    r = jnp.maximum(hn, 0.0)
    return r @ w2.T + b2


if __name__ == "__main__":
    key = jax.random.PRNGKey(0)
    kx, kp = jax.random.split(key)
    x = jax.random.normal(kx, (BATCH, STATE_SIZE), jnp.float32)
    w1, b1, gamma, beta, w2, b2 = init_params(kp, STATE_SIZE, PRUNE_PROBA)

    # Pack the four (D,) vectors into one (8, D) block (rows 4..7 zero padding).
    params = jnp.zeros((8, STATE_SIZE), jnp.float32)
    params = params.at[0].set(b1).at[1].set(gamma).at[2].set(beta).at[3].set(b2)

    out = transition_forward(
        x,
        w1.T.astype(jnp.bfloat16),   # (in, out) for kernel matmul, bf16 MXU path
        params,
        w2.T.astype(jnp.bfloat16),
    )
    out = jax.block_until_ready(out)

    assert out.shape == (BATCH, STATE_SIZE)
    ref_bf16 = reference_forward_bf16(x, w1, b1, gamma, beta, w2, b2)
    assert jnp.allclose(out, ref_bf16, atol=5e-3, rtol=5e-3), "mismatch vs bf16-matmul reference"
    ref_f32 = reference_forward_f32(x, w1, b1, gamma, beta, w2, b2)
    assert jnp.allclose(out, ref_f32, atol=5e-2, rtol=5e-2), "mismatch vs f32 reference"

    # TODO(synk): l1_loss / prune_weights / mask_grads are training-time parameter utilities,
    # not part of the forward pass; pruning is reproduced host-side in init_params only.
    print("KERNEL_OK")
</pallas_src>

<mosaic_0001>
module attributes {stable_mosaic.version = 11 : i64} {
  func.func @transition_kernel(%arg0: i32, %arg1: memref<256x128xf32, #tpu.memory_space<vmem>>, %arg2: memref<128x128xbf16, #tpu.memory_space<vmem>>, %arg3: memref<8x128xf32, #tpu.memory_space<vmem>>, %arg4: memref<128x128xbf16, #tpu.memory_space<vmem>>, %arg5: memref<256x128xf32, #tpu.memory_space<vmem>>) attributes {dimension_semantics = [#tpu.dimension_semantics<parallel>], iteration_bounds = array<i64: 1>, scalar_prefetch = 0 : i64, scratch_operands = 0 : i64, tpu.core_type = #tpu.core_type<tc>, window_params = [{transform_indices = @transform_0, window_bounds = array<i64: 256, 128>}, {pipeline_mode = #tpu.pipeline_mode<synchronous>, transform_indices = @transform_1, window_bounds = array<i64: 128, 128>}, {pipeline_mode = #tpu.pipeline_mode<synchronous>, transform_indices = @transform_2, window_bounds = array<i64: 8, 128>}, {pipeline_mode = #tpu.pipeline_mode<synchronous>, transform_indices = @transform_3, window_bounds = array<i64: 128, 128>}, {transform_indices = @transform_4, window_bounds = array<i64: 256, 128>}]} {
    %c0 = arith.constant 0 : index
    %c0_0 = arith.constant 0 : index
    %0 = vector.load %arg3[%c0, %c0_0] : memref<8x128xf32, #tpu.memory_space<vmem>>, vector<8x128xf32>
    %1 = vector.extract_strided_slice %0 {offsets = [0, 0], sizes = [1, 128], strides = [1, 1]} : vector<8x128xf32> to vector<1x128xf32>
    %2 = vector.extract_strided_slice %0 {offsets = [1, 0], sizes = [1, 128], strides = [1, 1]} : vector<8x128xf32> to vector<1x128xf32>
    %3 = vector.extract_strided_slice %0 {offsets = [2, 0], sizes = [1, 128], strides = [1, 1]} : vector<8x128xf32> to vector<1x128xf32>
    %4 = vector.extract_strided_slice %0 {offsets = [3, 0], sizes = [1, 128], strides = [1, 1]} : vector<8x128xf32> to vector<1x128xf32>
    %c0_1 = arith.constant 0 : index
    %c0_2 = arith.constant 0 : index
    %5 = vector.load %arg1[%c0_1, %c0_2] : memref<256x128xf32, #tpu.memory_space<vmem>>, vector<256x128xf32>
    %6 = arith.truncf %5 : vector<256x128xf32> to vector<256x128xbf16>
    %c0_3 = arith.constant 0 : index
    %c0_4 = arith.constant 0 : index
    %7 = vector.load %arg2[%c0_3, %c0_4] : memref<128x128xbf16, #tpu.memory_space<vmem>>, vector<128x128xbf16>
    %cst = arith.constant dense<0.000000e+00> : vector<256x128xf32>
    %8 = tpu.matmul %6, %7, %cst {dimension_numbers = #tpu.dot_dimension_numbers<[1], [0], [0], [1], [0, 0, 1, 1], [], []>} : vector<256x128xbf16>, vector<128x128xbf16>, vector<256x128xf32> -> vector<256x128xf32>
    %9 = vector.broadcast %1 : vector<1x128xf32> to vector<256x128xf32>
    %10 = arith.addf %8, %9 : vector<256x128xf32>
    %cst_5 = arith.constant dense<0.000000e+00> : vector<256xf32>
    %11 = vector.multi_reduction <add>, %10, %cst_5 [1] : vector<256x128xf32> to vector<256xf32>
    %12 = vector.shape_cast %11 : vector<256xf32> to vector<256x1xf32>
    %cst_6 = arith.constant 1.280000e+02 : f32
    %13 = vector.broadcast %cst_6 : f32 to vector<256x1xf32>
    %14 = arith.divf %12, %13 : vector<256x1xf32>
    %15 = arith.mulf %10, %10 : vector<256x128xf32>
    %cst_7 = arith.constant dense<0.000000e+00> : vector<256xf32>
    %16 = vector.multi_reduction <add>, %15, %cst_7 [1] : vector<256x128xf32> to vector<256xf32>
    %17 = vector.shape_cast %16 : vector<256xf32> to vector<256x1xf32>
    %cst_8 = arith.constant 1.280000e+02 : f32
    %18 = vector.broadcast %cst_8 : f32 to vector<256x1xf32>
    %19 = arith.divf %17, %18 : vector<256x1xf32>
    %20 = arith.mulf %14, %14 : vector<256x1xf32>
    %21 = arith.subf %19, %20 : vector<256x1xf32>
    %cst_9 = arith.constant 0.000000e+00 : f32
    %22 = vector.broadcast %cst_9 : f32 to vector<256x1xf32>
    %23 = arith.maximumf %21, %22 : vector<256x1xf32>
    %24 = vector.broadcast %14 : vector<256x1xf32> to vector<256x128xf32>
    %25 = arith.subf %10, %24 : vector<256x128xf32>
    %cst_10 = arith.constant 9.99999974E-6 : f32
    %26 = vector.broadcast %cst_10 : f32 to vector<256x1xf32>
    %27 = arith.addf %23, %26 : vector<256x1xf32>
    %28 = math.rsqrt %27 : vector<256x1xf32>
    %29 = vector.broadcast %28 : vector<256x1xf32> to vector<256x128xf32>
    %30 = arith.mulf %25, %29 : vector<256x128xf32>
    %31 = vector.broadcast %2 : vector<1x128xf32> to vector<256x128xf32>
    %32 = arith.mulf %30, %31 : vector<256x128xf32>
    %33 = vector.broadcast %3 : vector<1x128xf32> to vector<256x128xf32>
    %34 = arith.addf %32, %33 : vector<256x128xf32>
    %cst_11 = arith.constant 0.000000e+00 : f32
    %35 = vector.broadcast %cst_11 : f32 to vector<256x128xf32>
    %36 = arith.maximumf %34, %35 : vector<256x128xf32>
    %37 = arith.truncf %36 : vector<256x128xf32> to vector<256x128xbf16>
    %c0_12 = arith.constant 0 : index
    %c0_13 = arith.constant 0 : index
    %38 = vector.load %arg4[%c0_12, %c0_13] : memref<128x128xbf16, #tpu.memory_space<vmem>>, vector<128x128xbf16>
    %cst_14 = arith.constant dense<0.000000e+00> : vector<256x128xf32>
    %39 = tpu.matmul %37, %38, %cst_14 {dimension_numbers = #tpu.dot_dimension_numbers<[1], [0], [0], [1], [0, 0, 1, 1], [], []>} : vector<256x128xbf16>, vector<128x128xbf16>, vector<256x128xf32> -> vector<256x128xf32>
    %40 = vector.broadcast %4 : vector<1x128xf32> to vector<256x128xf32>
    %41 = arith.addf %39, %40 : vector<256x128xf32>
    %c0_15 = arith.constant 0 : index
    %c0_16 = arith.constant 0 : index
    %42 = vector.load %arg5[%c0_15, %c0_16] : memref<256x128xf32, #tpu.memory_space<vmem>>, vector<256x128xf32>
    tpu.vector_store %arg5[%c0_15, %c0_16], %41 {strides = array<i32>} : memref<256x128xf32, #tpu.memory_space<vmem>>, vector<256x128xf32>,
    return
  }
  func.func @transform_0(%arg0: i32) -> (i32, i32) {
    %c0_i32 = arith.constant 0 : i32
    %c0_i32_0 = arith.constant 0 : i32
    return %arg0, %c0_i32 : i32, i32
  }
  func.func @transform_1(%arg0: i32) -> (i32, i32) {
    %c0_i32 = arith.constant 0 : i32
    %c0_i32_0 = arith.constant 0 : i32
    %c0_i32_1 = arith.constant 0 : i32
    return %c0_i32, %c0_i32_0 : i32, i32
  }
  func.func @transform_2(%arg0: i32) -> (i32, i32) {
    %c0_i32 = arith.constant 0 : i32
    %c0_i32_0 = arith.constant 0 : i32
    %c0_i32_1 = arith.constant 0 : i32
    return %c0_i32, %c0_i32_0 : i32, i32
  }
  func.func @transform_3(%arg0: i32) -> (i32, i32) {
    %c0_i32 = arith.constant 0 : i32
    %c0_i32_0 = arith.constant 0 : i32
    %c0_i32_1 = arith.constant 0 : i32
    return %c0_i32, %c0_i32_0 : i32, i32
  }
  func.func @transform_4(%arg0: i32) -> (i32, i32) {
    %c0_i32 = arith.constant 0 : i32
    %c0_i32_0 = arith.constant 0 : i32
    return %arg0, %c0_i32 : i32, i32
  }
}

</mosaic_0001>

<llo_original>
// kernel: tpu_custom_call.1
$region0: #{tpu_custom_call.1}
  #allocation0 [shape = 'u32[]', space=smem, size = 0x4, offset = 0x4, fixed_abs, tag = 'smem constant byte address 0x4 - core index']
  #allocation1 [shape = 'u32[144,128]{1,0:T(1,128)}', space=vmem, size = 0x12000, scoped, tag = 'internal scratch']
  %s0 = inlined_call_operand.hbm [shape: f32[256,128], index: 0, kind: input, shape index: {}]
  %s1 = inlined_call_operand.hbm [shape: bf16[128,128], index: 1, kind: input, shape index: {}]
  %s2 = inlined_call_operand.hbm [shape: f32[8,128], index: 2, kind: input, shape index: {}]
  %s3 = inlined_call_operand.hbm [shape: bf16[128,128], index: 3, kind: input, shape index: {}]
  %s4 = inlined_call_operand.hbm [shape: f32[256,128], index: 4, kind: output, shape index: {}]
  %s5 = sld [smem:[#allocation0]]
  $region42: #{tpu_custom_call.1} parent=0
    _
  %s7 = ssub.s32 1, %s5
  %s8 = scalar_select 0, %s7, %s5
  $region1: #{tpu_custom_call.1} parent=0
    #allocation2 [shape = 'u8[131072]{0}', space=vmem, size = 0x20000, scoped, tag = 'input window, operand 0, single buffered']
    #allocation3 [shape = 's32[1]{0}', space=sflag, size = 0x4, scoped, tag = 'scoped memory for tpu_custom_call.1']
    #allocation4 [shape = 's32[1]{0}', space=sflag, size = 0x4, scoped, tag = 'scoped memory for tpu_custom_call.1']
    #allocation5 [shape = 'u8[32768]{0}', space=vmem, size = 0x8000, scoped, tag = 'input window, operand 1, single buffered']
    #allocation6 [shape = 's32[1]{0}', space=sflag, size = 0x4, scoped, tag = 'scoped memory for tpu_custom_call.1']
    #allocation7 [shape = 'u8[4096]{0}', space=vmem, size = 0x1000, scoped, tag = 'input window, operand 2, single buffered']
    #allocation8 [shape = 'u8[32768]{0}', space=vmem, size = 0x8000, scoped, tag = 'input window, operand 3, single buffered']
    #allocation9 [shape = 's32[1]{0}', space=sflag, size = 0x4, scoped, tag = 'scoped memory for tpu_custom_call.1']
    #allocation10 [shape = 'u8[131072]{0}', space=vmem, size = 0x20000, scoped, tag = 'output window, operand 0, single buffered']
    %9 = vsyncpa [#allocation3], 0
    %10 = vsyncpa [#allocation6], 0
    %11 = vsyncpa [#allocation9], 0
    %12 = vsyncpa [#allocation4], 0
    // Predicated region
    $region2: #{tpu_custom_call.1} parent=1 // pred_check
      _
    $region3: #{tpu_custom_call.1} parent=1 // pred_check_branch
      %14 = sbr.rel (0) target = $region5
    $region4: #{tpu_custom_call.1} parent=1 // pred_region
      %s16 = ssub.s32 4096, 4096
      %17 = vsyncadd [#allocation3], %s16
      %s18 = sshll.u32 [#allocation2], 4
      %s19 = int_to_ptr.vmem [resolvable:$true] %s18
      %24 = dma.hbm_to_vmem [thread:$0]  %s0, 4096, %s19, [#allocation3], 128, 128, 8
    $region5: #{tpu_custom_call.1} parent=1 // pred_fallthru
      _
    // Predicated region
    $region6: #{tpu_custom_call.1} parent=1 // pred_check
      _
    $region7: #{tpu_custom_call.1} parent=1 // pred_check_branch
      %26 = sbr.rel (0) target = $region9
    $region8: #{tpu_custom_call.1} parent=1 // pred_region
      %s28 = ssub.s32 1024, 1024
      %29 = vsyncadd [#allocation6], %s28
      %s30 = sshll.u32 [#allocation5], 4
      %s31 = int_to_ptr.vmem [resolvable:$true] %s30
      %36 = dma.hbm_to_vmem [thread:$0]  %s1, 1024, %s31, [#allocation6], 64, 64, 4
    $region9: #{tpu_custom_call.1} parent=1 // pred_fallthru
      _
    // Predicated region
    $region10: #{tpu_custom_call.1} parent=1 // pred_check
      _
    $region11: #{tpu_custom_call.1} parent=1 // pred_check_branch
      %38 = sbr.rel (0) target = $region13
    $region12: #{tpu_custom_call.1} parent=1 // pred_region
      %s40 = ssub.s32 128, 128
      %41 = vsyncadd [#allocation6], %s40
      %s43 = sshll.u32 [#allocation7], 4
      %s44 = int_to_ptr.vmem [resolvable:$true] %s43
      %46 = dma.hbm_to_vmem [thread:$0]  %s2, 128, %s44, [#allocation6]
    $region13: #{tpu_custom_call.1} parent=1 // pred_fallthru
      _
    // Predicated region
    $region14: #{tpu_custom_call.1} parent=1 // pred_check
      _
    $region15: #{tpu_custom_call.1} parent=1 // pred_check_branch
      %48 = sbr.rel (0) target = $region17
    $region16: #{tpu_custom_call.1} parent=1 // pred_region
      %s50 = ssub.s32 1024, 1024
      %51 = vsyncadd [#allocation9], %s50
      %s52 = sshll.u32 [#allocation8], 4
      %s53 = int_to_ptr.vmem [resolvable:$true] %s52
      %58 = dma.hbm_to_vmem [thread:$0]  %s3, 1024, %s53, [#allocation9], 64, 64, 4
    $region17: #{tpu_custom_call.1} parent=1 // pred_fallthru
      _
    // Predicated region
    $region18: #{tpu_custom_call.1} parent=1 // pred_check
      _
    $region19: #{tpu_custom_call.1} parent=1 // pred_check_branch
      %60 = sbr.rel (0) target = $region21
    $region20: #{tpu_custom_call.1} parent=1 // pred_region
      %61 = dma.done [#allocation3], 4096
    $region21: #{tpu_custom_call.1} parent=1 // pred_fallthru
      _
    // Predicated region
    $region22: #{tpu_custom_call.1} parent=1 // pred_check
      _
    $region23: #{tpu_custom_call.1} parent=1 // pred_check_branch
      %63 = sbr.rel (0) target = $region25
    $region24: #{tpu_custom_call.1} parent=1 // pred_region
      %64 = dma.done [#allocation6], 1024
    $region25: #{tpu_custom_call.1} parent=1 // pred_fallthru
      _
    // Predicated region
    $region26: #{tpu_custom_call.1} parent=1 // pred_check
      _
    $region27: #{tpu_custom_call.1} parent=1 // pred_check_branch
      %66 = sbr.rel (0) target = $region29
    $region28: #{tpu_custom_call.1} parent=1 // pred_region
      %67 = dma.done [#allocation6], 128
    $region29: #{tpu_custom_call.1} parent=1 // pred_fallthru
      _
    // Predicated region
    $region30: #{tpu_custom_call.1} parent=1 // pred_check
      _
    $region31: #{tpu_custom_call.1} parent=1 // pred_check_branch
      %69 = sbr.rel (0) target = $region33
    $region32: #{tpu_custom_call.1} parent=1 // pred_region
      %70 = dma.done [#allocation9], 1024
    $region33: #{tpu_custom_call.1} parent=1 // pred_fallthru
      _
    %v72 = vld [vmem:[#allocation7] sm:$0xff]
    %v73 = vld [vmem:[#allocation2] sm:$0xff]
    %v74 = vld [vmem:[#allocation2 + $0x8] sm:$0xff]
    %v75 = vld [vmem:[#allocation2 + $0x10] sm:$0xff]
    %v76 = vld [vmem:[#allocation2 + $0x18] sm:$0xff]
    %v77 = vld [vmem:[#allocation2 + $0x20] sm:$0xff]
    %v78 = vld [vmem:[#allocation2 + $0x28] sm:$0xff]
    %v79 = vld [vmem:[#allocation2 + $0x30] sm:$0xff]
    %v80 = vld [vmem:[#allocation2 + $0x38] sm:$0xff]
    %v81 = vld [vmem:[#allocation2 + $0x40] sm:$0xff]
    %v82 = vld [vmem:[#allocation2 + $0x48] sm:$0xff]
    %v83 = vld [vmem:[#allocation2 + $0x50] sm:$0xff]
    %v84 = vld [vmem:[#allocation2 + $0x58] sm:$0xff]
    %v85 = vld [vmem:[#allocation2 + $0x60] sm:$0xff]
    %v86 = vld [vmem:[#allocation2 + $0x68] sm:$0xff]
    %v87 = vld [vmem:[#allocation2 + $0x70] sm:$0xff]
    %v88 = vld [vmem:[#allocation2 + $0x78] sm:$0xff]
    %v89 = vld [vmem:[#allocation2 + $0x80] sm:$0xff]
    %v90 = vld [vmem:[#allocation2 + $0x88] sm:$0xff]
    %v91 = vld [vmem:[#allocation2 + $0x90] sm:$0xff]
    %v92 = vld [vmem:[#allocation2 + $0x98] sm:$0xff]
    %v93 = vld [vmem:[#allocation2 + $0xa0] sm:$0xff]
    %v94 = vld [vmem:[#allocation2 + $0xa8] sm:$0xff]
    %v95 = vld [vmem:[#allocation2 + $0xb0] sm:$0xff]
    %v96 = vld [vmem:[#allocation2 + $0xb8] sm:$0xff]
    %v97 = vld [vmem:[#allocation2 + $0xc0] sm:$0xff]
    %v98 = vld [vmem:[#allocation2 + $0xc8] sm:$0xff]
    %v99 = vld [vmem:[#allocation2 + $0xd0] sm:$0xff]
    %v100 = vld [vmem:[#allocation2 + $0xd8] sm:$0xff]
    %v101 = vld [vmem:[#allocation2 + $0xe0] sm:$0xff]
    %v102 = vld [vmem:[#allocation2 + $0xe8] sm:$0xff]
    %v103 = vld [vmem:[#allocation2 + $0xf0] sm:$0xff]
    %v104 = vld [vmem:[#allocation2 + $0xf8] sm:$0xff]
    %v105 = vpack.c.bf16 %v74, %v73
    %v106 = vpack.c.bf16 %v76, %v75
    %v107 = vpack.c.bf16 %v78, %v77
    %v108 = vpack.c.bf16 %v80, %v79
    %v109 = vpack.c.bf16 %v82, %v81
    %v110 = vpack.c.bf16 %v84, %v83
    %v111 = vpack.c.bf16 %v86, %v85
    %v112 = vpack.c.bf16 %v88, %v87
    %v113 = vpack.c.bf16 %v90, %v89
    %v114 = vpack.c.bf16 %v92, %v91
    %v115 = vpack.c.bf16 %v94, %v93
    %v116 = vpack.c.bf16 %v96, %v95
    %v117 = vpack.c.bf16 %v98, %v97
    %v118 = vpack.c.bf16 %v100, %v99
    %v119 = vpack.c.bf16 %v102, %v101
    %v120 = vpack.c.bf16 %v104, %v103
    %v121 = vld [vmem:[#allocation5] sm:$0xf]
    %v122 = vld [vmem:[#allocation5 + $0x4] sm:$0xf]
    %v123 = vld [vmem:[#allocation5 + $0x8] sm:$0xf]
    %v124 = vld [vmem:[#allocation5 + $0xc] sm:$0xf]
    %v125 = vld [vmem:[#allocation5 + $0x10] sm:$0xf]
    %v126 = vld [vmem:[#allocation5 + $0x14] sm:$0xf]
    %v127 = vld [vmem:[#allocation5 + $0x18] sm:$0xf]
    %v128 = vld [vmem:[#allocation5 + $0x1c] sm:$0xf]
    %v129 = vld [vmem:[#allocation5 + $0x20] sm:$0xf]
    %v130 = vld [vmem:[#allocation5 + $0x24] sm:$0xf]
    %v131 = vld [vmem:[#allocation5 + $0x28] sm:$0xf]
    %v132 = vld [vmem:[#allocation5 + $0x2c] sm:$0xf]
    %v133 = vld [vmem:[#allocation5 + $0x30] sm:$0xf]
    %v134 = vld [vmem:[#allocation5 + $0x34] sm:$0xf]
    %v135 = vld [vmem:[#allocation5 + $0x38] sm:$0xf]
    %v136 = vld [vmem:[#allocation5 + $0x3c] sm:$0xf]
    %v137 = vlaneseq
    %v138 = vshrl.u32 %v137, 7
    %v139 = vsub.s32 0, %v138
    %v140 = vrot.slane %v72, %v139
    %v157 = vunpack.c.l.b16 %v121
    %v158 = vunpack.c.l.b16 %v122
    %v159 = vunpack.c.l.b16 %v123
    %v160 = vunpack.c.l.b16 %v124
    %v161 = vunpack.c.l.b16 %v125
    %v162 = vunpack.c.l.b16 %v126
    %v163 = vunpack.c.l.b16 %v127
    %v164 = vunpack.c.l.b16 %v128
    %v165 = vunpack.c.l.b16 %v129
    %v166 = vunpack.c.l.b16 %v130
    %v167 = vunpack.c.l.b16 %v131
    %v168 = vunpack.c.l.b16 %v132
    %v169 = vunpack.c.l.b16 %v133
    %v170 = vunpack.c.l.b16 %v134
    %v171 = vunpack.c.l.b16 %v135
    %v172 = vunpack.c.l.b16 %v136
    %v173 = vpack.c.b16 %v158, %v157
    %v174 = vpack.c.b16 %v160, %v159
    %v175 = vpack.c.b16 %v162, %v161
    %v176 = vpack.c.b16 %v164, %v163
    %v177 = vpack.c.b16 %v166, %v165
    %v178 = vpack.c.b16 %v168, %v167
    %v179 = vpack.c.b16 %v170, %v169
    %v180 = vpack.c.b16 %v172, %v171
    %189 = vmatprep.subr.bf16.mxu0 0
    %190 = vmatpush1.bf16.msra.mxu0 %v173
    %191 = vmatprep.subr.bf16.mxu0 0
    %192 = vmatpush1.bf16.msra.mxu0 %v174
    %193 = vmatprep.subr.bf16.mxu0 0
    %194 = vmatpush1.bf16.msra.mxu0 %v175
    %195 = vmatprep.subr.bf16.mxu0 0
    %196 = vmatpush1.bf16.msra.mxu0 %v176
    %197 = vmatprep.subr.bf16.mxu0 0
    %198 = vmatpush1.bf16.msra.mxu0 %v177
    %199 = vmatprep.subr.bf16.mxu0 0
    %200 = vmatpush1.bf16.msra.mxu0 %v178
    %201 = vmatprep.subr.bf16.mxu0 0
    %202 = vmatpush1.bf16.msra.mxu0 %v179
    %203 = vmatprep.subr.bf16.mxu0 0
    %204 = vmatpush1.bf16.msra.mxu0 %v180
    %205 = vmatprep.subr.bf16.mxu0 0
    %206 = vmatpush1.bf16.msra.mxu0 0
    %207 = vmatprep.subr.bf16.mxu0 0
    %208 = vmatpush1.bf16.msra.mxu0 0
    %209 = vmatprep.subr.bf16.mxu0 0
    %210 = vmatpush1.bf16.msra.mxu0 0
    %211 = vmatprep.subr.bf16.mxu0 0
    %212 = vmatpush1.bf16.msra.mxu0 0
    %213 = vmatprep.subr.bf16.mxu0 0
    %214 = vmatpush1.bf16.msra.mxu0 0
    %215 = vmatprep.subr.bf16.mxu0 0
    %216 = vmatpush1.bf16.msra.mxu0 0
    %217 = vmatprep.subr.bf16.mxu0 0
    %218 = vmatpush1.bf16.msra.mxu0 0
    %219 = vmatprep.subr.bf16.mxu0 0
    %220 = vmatpush1.bf16.msra.mxu0 0
    %221 = vmatprep.mubr.bf16.mxu0 0
    %222 = vmatmul.mubr.bf16.gmra.mrb[0].mxu0 %v105
    %v223 = vpop.f32.mrb[0].mxu0
    %v224 = vadd.f32 %v140, %v223
    %v225 = vpop.f32.mrb[0].mxu0
    %v226 = vpop.f32.mrb[0].mxu0
    %v227 = vadd.f32 %v140, %v226
    %v228 = vpop.f32.mrb[0].mxu0
    %229 = vmatprep.mubr.bf16.mxu0 0
    %230 = vmatmul.mubr.bf16.gmra.mrb[0].mxu0 %v106
    %v231 = vpop.f32.mrb[0].mxu0
    %v232 = vadd.f32 %v140, %v231
    %v233 = vpop.f32.mrb[0].mxu0
    %v234 = vpop.f32.mrb[0].mxu0
    %v235 = vadd.f32 %v140, %v234
    %v236 = vpop.f32.mrb[0].mxu0
    %237 = vmatprep.mubr.bf16.mxu0 0
    %238 = vmatmul.mubr.bf16.gmra.mrb[0].mxu0 %v107
    %v239 = vpop.f32.mrb[0].mxu0
    %v240 = vadd.f32 %v140, %v239
    %v241 = vpop.f32.mrb[0].mxu0
    %v242 = vpop.f32.mrb[0].mxu0
    %v243 = vadd.f32 %v140, %v242
    %v244 = vpop.f32.mrb[0].mxu0
    %245 = vmatprep.mubr.bf16.mxu0 0
    %246 = vmatmul.mubr.bf16.gmra.mrb[0].mxu0 %v108
    %v247 = vpop.f32.mrb[0].mxu0
    %v248 = vadd.f32 %v140, %v247
    %v249 = vpop.f32.mrb[0].mxu0
    %v250 = vpop.f32.mrb[0].mxu0
    %v251 = vadd.f32 %v140, %v250
    %v252 = vpop.f32.mrb[0].mxu0
    %253 = vmatprep.mubr.bf16.mxu0 0
    %254 = vmatmul.mubr.bf16.gmra.mrb[0].mxu0 %v109
    %v255 = vpop.f32.mrb[0].mxu0
    %v256 = vadd.f32 %v140, %v255
    %v257 = vpop.f32.mrb[0].mxu0
    %v258 = vpop.f32.mrb[0].mxu0
    %v259 = vadd.f32 %v140, %v258
    %v260 = vpop.f32.mrb[0].mxu0
    %261 = vmatprep.mubr.bf16.mxu0 0
    %262 = vmatmul.mubr.bf16.gmra.mrb[0].mxu0 %v110
    %v263 = vpop.f32.mrb[0].mxu0
    %v264 = vadd.f32 %v140, %v263
    %v265 = vpop.f32.mrb[0].mxu0
    %v266 = vpop.f32.mrb[0].mxu0
    %v267 = vadd.f32 %v140, %v266
    %v268 = vpop.f32.mrb[0].mxu0
    %269 = vmatprep.mubr.bf16.mxu0 0
    %270 = vmatmul.mubr.bf16.gmra.mrb[0].mxu0 %v111
    %v271 = vpop.f32.mrb[0].mxu0
    %v272 = vadd.f32 %v140, %v271
    %v273 = vpop.f32.mrb[0].mxu0
    %v274 = vpop.f32.mrb[0].mxu0
    %v275 = vadd.f32 %v140, %v274
    %v276 = vpop.f32.mrb[0].mxu0
    %277 = vmatprep.mubr.bf16.mxu0 0
    %278 = vmatmul.mubr.bf16.gmra.mrb[0].mxu0 %v112
    %v279 = vpop.f32.mrb[0].mxu0
    %v280 = vadd.f32 %v140, %v279
    %v281 = vpop.f32.mrb[0].mxu0
    %v282 = vpop.f32.mrb[0].mxu0
    %v283 = vadd.f32 %v140, %v282
    %v284 = vpop.f32.mrb[0].mxu0
    %285 = vmatprep.mubr.bf16.mxu0 0
    %286 = vmatmul.mubr.bf16.gmra.mrb[0].mxu0 %v113
    %v287 = vpop.f32.mrb[0].mxu0
    %v288 = vadd.f32 %v140, %v287
    %v289 = vpop.f32.mrb[0].mxu0
    %v290 = vpop.f32.mrb[0].mxu0
    %v291 = vadd.f32 %v140, %v290
    %v292 = vpop.f32.mrb[0].mxu0
    %293 = vmatprep.mubr.bf16.mxu0 0
    %294 = vmatmul.mubr.bf16.gmra.mrb[0].mxu0 %v114
    %v295 = vpop.f32.mrb[0].mxu0
    %v296 = vadd.f32 %v140, %v295
    %v297 = vpop.f32.mrb[0].mxu0
    %v298 = vpop.f32.mrb[0].mxu0
    %v299 = vadd.f32 %v140, %v298
    %v300 = vpop.f32.mrb[0].mxu0
    %301 = vmatprep.mubr.bf16.mxu0 0
    %302 = vmatmul.mubr.bf16.gmra.mrb[0].mxu0 %v115
    %v303 = vpop.f32.mrb[0].mxu0
    %v304 = vadd.f32 %v140, %v303
    %v305 = vpop.f32.mrb[0].mxu0
    %v306 = vpop.f32.mrb[0].mxu0
    %v307 = vadd.f32 %v140, %v306
    %v308 = vpop.f32.mrb[0].mxu0
    %309 = vmatprep.mubr.bf16.mxu0 0
    %310 = vmatmul.mubr.bf16.gmra.mrb[0].mxu0 %v116
    %v311 = vpop.f32.mrb[0].mxu0
    %v312 = vadd.f32 %v140, %v311
    %v313 = vpop.f32.mrb[0].mxu0
    %v314 = vpop.f32.mrb[0].mxu0
    %v315 = vadd.f32 %v140, %v314
    %v316 = vpop.f32.mrb[0].mxu0
    %317 = vmatprep.mubr.bf16.mxu0 0
    %318 = vmatmul.mubr.bf16.gmra.mrb[0].mxu0 %v117
    %v319 = vpop.f32.mrb[0].mxu0
    %v320 = vadd.f32 %v140, %v319
    %v321 = vpop.f32.mrb[0].mxu0
    %v322 = vpop.f32.mrb[0].mxu0
    %v323 = vadd.f32 %v140, %v322
    %v324 = vpop.f32.mrb[0].mxu0
    %325 = vmatprep.mubr.bf16.mxu0 0
    %326 = vmatmul.mubr.bf16.gmra.mrb[0].mxu0 %v118
    %v327 = vpop.f32.mrb[0].mxu0
    %v328 = vadd.f32 %v140, %v327
    %v329 = vpop.f32.mrb[0].mxu0
    %v330 = vpop.f32.mrb[0].mxu0
    %v331 = vadd.f32 %v140, %v330
    %v332 = vpop.f32.mrb[0].mxu0
    %333 = vmatprep.mubr.bf16.mxu0 0
    %334 = vmatmul.mubr.bf16.gmra.mrb[0].mxu0 %v119
    %v335 = vpop.f32.mrb[0].mxu0
    %v336 = vadd.f32 %v140, %v335
    %v337 = vpop.f32.mrb[0].mxu0
    %v338 = vpop.f32.mrb[0].mxu0
    %v339 = vadd.f32 %v140, %v338
    %v340 = vpop.f32.mrb[0].mxu0
    %341 = vmatprep.mubr.bf16.mxu0 0
    %342 = vmatmul.mubr.bf16.gmra.mrb[0].mxu0 %v120
    %v343 = vpop.f32.mrb[0].mxu0
    %v344 = vadd.f32 %v140, %v343
    %v345 = vpop.f32.mrb[0].mxu0
    %v346 = vpop.f32.mrb[0].mxu0
    %v347 = vadd.f32 %v140, %v346
    %v348 = vpop.f32.mrb[0].mxu0
    %349 = vdwg.mxu0
    %350 = vadd.xlane.f32.xlu0 %v224
    %v351 = vpop.xlane.xlu0 %350
    %352 = vadd.xlane.f32.xlu0 %v227
    %v353 = vpop.xlane.xlu0 %352
    %354 = vadd.xlane.f32.xlu0 %v232
    %v355 = vpop.xlane.xlu0 %354
    %356 = vadd.xlane.f32.xlu0 %v235
    %v357 = vpop.xlane.xlu0 %356
    %358 = vadd.xlane.f32.xlu0 %v240
    %v359 = vpop.xlane.xlu0 %358
    %360 = vadd.xlane.f32.xlu0 %v243
    %v361 = vpop.xlane.xlu0 %360
    %362 = vadd.xlane.f32.xlu0 %v248
    %v363 = vpop.xlane.xlu0 %362
    %364 = vadd.xlane.f32.xlu0 %v251
    %v365 = vpop.xlane.xlu0 %364
    %366 = vadd.xlane.f32.xlu0 %v256
    %v367 = vpop.xlane.xlu0 %366
    %368 = vadd.xlane.f32.xlu0 %v259
    %v369 = vpop.xlane.xlu0 %368
    %370 = vadd.xlane.f32.xlu0 %v264
    %v371 = vpop.xlane.xlu0 %370
    %372 = vadd.xlane.f32.xlu0 %v267
    %v373 = vpop.xlane.xlu0 %372
    %374 = vadd.xlane.f32.xlu0 %v272
    %v375 = vpop.xlane.xlu0 %374
    %376 = vadd.xlane.f32.xlu0 %v275
    %v377 = vpop.xlane.xlu0 %376
    %378 = vadd.xlane.f32.xlu0 %v280
    %v379 = vpop.xlane.xlu0 %378
    %380 = vadd.xlane.f32.xlu0 %v283
    %v381 = vpop.xlane.xlu0 %380
    %382 = vadd.xlane.f32.xlu0 %v288
    %v383 = vpop.xlane.xlu0 %382
    %384 = vadd.xlane.f32.xlu0 %v291
    %v385 = vpop.xlane.xlu0 %384
    %386 = vadd.xlane.f32.xlu0 %v296
    %v387 = vpop.xlane.xlu0 %386
    %388 = vadd.xlane.f32.xlu0 %v299
    %v389 = vpop.xlane.xlu0 %388
    %390 = vadd.xlane.f32.xlu0 %v304
    %v391 = vpop.xlane.xlu0 %390
    %392 = vadd.xlane.f32.xlu0 %v307
    %v393 = vpop.xlane.xlu0 %392
    %394 = vadd.xlane.f32.xlu0 %v312
    %v395 = vpop.xlane.xlu0 %394
    %396 = vadd.xlane.f32.xlu0 %v315
    %v397 = vpop.xlane.xlu0 %396
    %398 = vadd.xlane.f32.xlu0 %v320
    %v399 = vpop.xlane.xlu0 %398
    %400 = vadd.xlane.f32.xlu0 %v323
    %v401 = vpop.xlane.xlu0 %400
    %402 = vadd.xlane.f32.xlu0 %v328
    %v403 = vpop.xlane.xlu0 %402
    %404 = vadd.xlane.f32.xlu0 %v331
    %v405 = vpop.xlane.xlu0 %404
    %406 = vadd.xlane.f32.xlu0 %v336
    %v407 = vpop.xlane.xlu0 %406
    %408 = vadd.xlane.f32.xlu0 %v339
    %v409 = vpop.xlane.xlu0 %408
    %410 = vadd.xlane.f32.xlu0 %v344
    %v411 = vpop.xlane.xlu0 %410
    %412 = vadd.xlane.f32.xlu0 %v347
    %v413 = vpop.xlane.xlu0 %412
    %v414 = vrcp.pop 128.0
    %v415 = vmul.f32 %v351, %v414
    %v416 = vmul.f32 %v353, %v414
    %v417 = vmul.f32 %v355, %v414
    %v418 = vmul.f32 %v357, %v414
    %v419 = vmul.f32 %v359, %v414
    %v420 = vmul.f32 %v361, %v414
    %v421 = vmul.f32 %v363, %v414
    %v422 = vmul.f32 %v365, %v414
    %v423 = vmul.f32 %v367, %v414
    %v424 = vmul.f32 %v369, %v414
    %v425 = vmul.f32 %v371, %v414
    %v426 = vmul.f32 %v373, %v414
    %v427 = vmul.f32 %v375, %v414
    %v428 = vmul.f32 %v377, %v414
    %v429 = vmul.f32 %v379, %v414
    %v430 = vmul.f32 %v381, %v414
    %v431 = vmul.f32 %v383, %v414
    %v432 = vmul.f32 %v385, %v414
    %v433 = vmul.f32 %v387, %v414
    %v434 = vmul.f32 %v389, %v414
    %v435 = vmul.f32 %v391, %v414
    %v436 = vmul.f32 %v393, %v414
    %v437 = vmul.f32 %v395, %v414
    %v438 = vmul.f32 %v397, %v414
    %v439 = vmul.f32 %v399, %v414
    %v440 = vmul.f32 %v401, %v414
    %v441 = vmul.f32 %v403, %v414
    %v442 = vmul.f32 %v405, %v414
    %v443 = vmul.f32 %v407, %v414
    %v444 = vmul.f32 %v409, %v414
    %v445 = vmul.f32 %v411, %v414
    %v446 = vmul.f32 %v413, %v414
    %v447 = vmul.f32 %v224, %v224
    %v448 = vmul.f32 %v227, %v227
    %v449 = vmul.f32 %v232, %v232
    %v450 = vmul.f32 %v235, %v235
    %v451 = vmul.f32 %v240, %v240
    %v452 = vmul.f32 %v243, %v243
    %v453 = vmul.f32 %v248, %v248
    %v454 = vmul.f32 %v251, %v251
    %v455 = vmul.f32 %v256, %v256
    %v456 = vmul.f32 %v259, %v259
    %v457 = vmul.f32 %v264, %v264
    %v458 = vmul.f32 %v267, %v267
    %v459 = vmul.f32 %v272, %v272
    %v460 = vmul.f32 %v275, %v275
    %v461 = vmul.f32 %v280, %v280
    %v462 = vmul.f32 %v283, %v283
    %v463 = vmul.f32 %v288, %v288
    %v464 = vmul.f32 %v291, %v291
    %v465 = vmul.f32 %v296, %v296
    %v466 = vmul.f32 %v299, %v299
    %v467 = vmul.f32 %v304, %v304
    %v468 = vmul.f32 %v307, %v307
    %v469 = vmul.f32 %v312, %v312
    %v470 = vmul.f32 %v315, %v315
    %v471 = vmul.f32 %v320, %v320
    %v472 = vmul.f32 %v323, %v323
    %v473 = vmul.f32 %v328, %v328
    %v474 = vmul.f32 %v331, %v331
    %v475 = vmul.f32 %v336, %v336
    %v476 = vmul.f32 %v339, %v339
    %v477 = vmul.f32 %v344, %v344
    %v478 = vmul.f32 %v347, %v347
    %479 = vadd.xlane.f32.xlu0 %v447
    %v480 = vpop.xlane.xlu0 %479
    %481 = vadd.xlane.f32.xlu0 %v448
    %v482 = vpop.xlane.xlu0 %481
    %483 = vadd.xlane.f32.xlu0 %v449
    %v484 = vpop.xlane.xlu0 %483
    %485 = vadd.xlane.f32.xlu0 %v450
    %v486 = vpop.xlane.xlu0 %485
    %487 = vadd.xlane.f32.xlu0 %v451
    %v488 = vpop.xlane.xlu0 %487
    %489 = vadd.xlane.f32.xlu0 %v452
    %v490 = vpop.xlane.xlu0 %489
    %491 = vadd.xlane.f32.xlu0 %v453
    %v492 = vpop.xlane.xlu0 %491
    %493 = vadd.xlane.f32.xlu0 %v454
    %v494 = vpop.xlane.xlu0 %493
    %495 = vadd.xlane.f32.xlu0 %v455
    %v496 = vpop.xlane.xlu0 %495
    %497 = vadd.xlane.f32.xlu0 %v456
    %v498 = vpop.xlane.xlu0 %497
    %499 = vadd.xlane.f32.xlu0 %v457
    %v500 = vpop.xlane.xlu0 %499
    %501 = vadd.xlane.f32.xlu0 %v458
    %v502 = vpop.xlane.xlu0 %501
    %503 = vadd.xlane.f32.xlu0 %v459
    %v504 = vpop.xlane.xlu0 %503
    %505 = vadd.xlane.f32.xlu0 %v460
    %v506 = vpop.xlane.xlu0 %505
    %507 = vadd.xlane.f32.xlu0 %v461
    %v508 = vpop.xlane.xlu0 %507
    %509 = vadd.xlane.f32.xlu0 %v462
    %v510 = vpop.xlane.xlu0 %509
    %511 = vadd.xlane.f32.xlu0 %v463
    %v512 = vpop.xlane.xlu0 %511
    %513 = vadd.xlane.f32.xlu0 %v464
    %v514 = vpop.xlane.xlu0 %513
    %515 = vadd.xlane.f32.xlu0 %v465
    %v516 = vpop.xlane.xlu0 %515
    %517 = vadd.xlane.f32.xlu0 %v466
    %v518 = vpop.xlane.xlu0 %517
    %519 = vadd.xlane.f32.xlu0 %v467
    %v520 = vpop.xlane.xlu0 %519
    %521 = vadd.xlane.f32.xlu0 %v468
    %v522 = vpop.xlane.xlu0 %521
    %523 = vadd.xlane.f32.xlu0 %v469
    %v524 = vpop.xlane.xlu0 %523
    %525 = vadd.xlane.f32.xlu0 %v470
    %v526 = vpop.xlane.xlu0 %525
    %527 = vadd.xlane.f32.xlu0 %v471
    %v528 = vpop.xlane.xlu0 %527
    %529 = vadd.xlane.f32.xlu0 %v472
    %v530 = vpop.xlane.xlu0 %529
    %531 = vadd.xlane.f32.xlu0 %v473
    %v532 = vpop.xlane.xlu0 %531
    %533 = vadd.xlane.f32.xlu0 %v474
    %v534 = vpop.xlane.xlu0 %533
    %535 = vadd.xlane.f32.xlu0 %v475
    %v536 = vpop.xlane.xlu0 %535
    %537 = vadd.xlane.f32.xlu0 %v476
    %v538 = vpop.xlane.xlu0 %537
    %539 = vadd.xlane.f32.xlu0 %v477
    %v540 = vpop.xlane.xlu0 %539
    %541 = vadd.xlane.f32.xlu0 %v478
    %v542 = vpop.xlane.xlu0 %541
    %v543 = vmul.f32 %v480, %v414
    %v544 = vmul.f32 %v482, %v414
    %v545 = vmul.f32 %v484, %v414
    %v546 = vmul.f32 %v486, %v414
    %v547 = vmul.f32 %v488, %v414
    %v548 = vmul.f32 %v490, %v414
    %v549 = vmul.f32 %v492, %v414
    %v550 = vmul.f32 %v494, %v414
    %v551 = vmul.f32 %v496, %v414
    %v552 = vmul.f32 %v498, %v414
    %v553 = vmul.f32 %v500, %v414
    %v554 = vmul.f32 %v502, %v414
    %v555 = vmul.f32 %v504, %v414
    %v556 = vmul.f32 %v506, %v414
    %v557 = vmul.f32 %v508, %v414
    %v558 = vmul.f32 %v510, %v414
    %v559 = vmul.f32 %v512, %v414
    %v560 = vmul.f32 %v514, %v414
    %v561 = vmul.f32 %v516, %v414
    %v562 = vmul.f32 %v518, %v414
    %v563 = vmul.f32 %v520, %v414
    %v564 = vmul.f32 %v522, %v414
    %v565 = vmul.f32 %v524, %v414
    %v566 = vmul.f32 %v526, %v414
    %v567 = vmul.f32 %v528, %v414
    %v568 = vmul.f32 %v530, %v414
    %v569 = vmul.f32 %v532, %v414
    %v570 = vmul.f32 %v534, %v414
    %v571 = vmul.f32 %v536, %v414
    %v572 = vmul.f32 %v538, %v414
    %v573 = vmul.f32 %v540, %v414
    %v574 = vmul.f32 %v542, %v414
    %v575 = vmul.f32 %v415, %v415
    %v576 = vmul.f32 %v416, %v416
    %v577 = vmul.f32 %v417, %v417
    %v578 = vmul.f32 %v418, %v418
    %v579 = vmul.f32 %v419, %v419
    %v580 = vmul.f32 %v420, %v420
    %v581 = vmul.f32 %v421, %v421
    %v582 = vmul.f32 %v422, %v422
    %v583 = vmul.f32 %v423, %v423
    %v584 = vmul.f32 %v424, %v424
    %v585 = vmul.f32 %v425, %v425
    %v586 = vmul.f32 %v426, %v426
    %v587 = vmul.f32 %v427, %v427
    %v588 = vmul.f32 %v428, %v428
    %v589 = vmul.f32 %v429, %v429
    %v590 = vmul.f32 %v430, %v430
    %v591 = vmul.f32 %v431, %v431
    %v592 = vmul.f32 %v432, %v432
    %v593 = vmul.f32 %v433, %v433
    %v594 = vmul.f32 %v434, %v434
    %v595 = vmul.f32 %v435, %v435
    %v596 = vmul.f32 %v436, %v436
    %v597 = vmul.f32 %v437, %v437
    %v598 = vmul.f32 %v438, %v438
    %v599 = vmul.f32 %v439, %v439
    %v600 = vmul.f32 %v440, %v440
    %v601 = vmul.f32 %v441, %v441
    %v602 = vmul.f32 %v442, %v442
    %v603 = vmul.f32 %v443, %v443
    %v604 = vmul.f32 %v444, %v444
    %v605 = vmul.f32 %v445, %v445
    %v606 = vmul.f32 %v446, %v446
    %v607 = vsub.f32 %v543, %v575
    %v608 = vsub.f32 %v544, %v576
    %v609 = vsub.f32 %v545, %v577
    %v610 = vsub.f32 %v546, %v578
    %v611 = vsub.f32 %v547, %v579
    %v612 = vsub.f32 %v548, %v580
    %v613 = vsub.f32 %v549, %v581
    %v614 = vsub.f32 %v550, %v582
    %v615 = vsub.f32 %v551, %v583
    %v616 = vsub.f32 %v552, %v584
    %v617 = vsub.f32 %v553, %v585
    %v618 = vsub.f32 %v554, %v586
    %v619 = vsub.f32 %v555, %v587
    %v620 = vsub.f32 %v556, %v588
    %v621 = vsub.f32 %v557, %v589
    %v622 = vsub.f32 %v558, %v590
    %v623 = vsub.f32 %v559, %v591
    %v624 = vsub.f32 %v560, %v592
    %v625 = vsub.f32 %v561, %v593
    %v626 = vsub.f32 %v562, %v594
    %v627 = vsub.f32 %v563, %v595
    %v628 = vsub.f32 %v564, %v596
    %v629 = vsub.f32 %v565, %v597
    %v630 = vsub.f32 %v566, %v598
    %v631 = vsub.f32 %v567, %v599
    %v632 = vsub.f32 %v568, %v600
    %v633 = vsub.f32 %v569, %v601
    %v634 = vsub.f32 %v570, %v602
    %v635 = vsub.f32 %v571, %v603
    %v636 = vsub.f32 %v572, %v604
    %v637 = vsub.f32 %v573, %v605
    %v638 = vsub.f32 %v574, %v606
    %v639 = vmax.f32 %v607, 0.0
    %v640 = vmax.f32 %v608, 0.0
    %v641 = vmax.f32 %v609, 0.0
    %v642 = vmax.f32 %v610, 0.0
    %v643 = vmax.f32 %v611, 0.0
    %v644 = vmax.f32 %v612, 0.0
    %v645 = vmax.f32 %v613, 0.0
    %v646 = vmax.f32 %v614, 0.0
    %v647 = vmax.f32 %v615, 0.0
    %v648 = vmax.f32 %v616, 0.0
    %v649 = vmax.f32 %v617, 0.0
    %v650 = vmax.f32 %v618, 0.0
    %v651 = vmax.f32 %v619, 0.0
    %v652 = vmax.f32 %v620, 0.0
    %v653 = vmax.f32 %v621, 0.0
    %v654 = vmax.f32 %v622, 0.0
    %v655 = vmax.f32 %v623, 0.0
    %v656 = vmax.f32 %v624, 0.0
    %v657 = vmax.f32 %v625, 0.0
    %v658 = vmax.f32 %v626, 0.0
    %v659 = vmax.f32 %v627, 0.0
    %v660 = vmax.f32 %v628, 0.0
    %v661 = vmax.f32 %v629, 0.0
    %v662 = vmax.f32 %v630, 0.0
    %v663 = vmax.f32 %v631, 0.0
    %v664 = vmax.f32 %v632, 0.0
    %v665 = vmax.f32 %v633, 0.0
    %v666 = vmax.f32 %v634, 0.0
    %v667 = vmax.f32 %v635, 0.0
    %v668 = vmax.f32 %v636, 0.0
    %v669 = vmax.f32 %v637, 0.0
    %v670 = vmax.f32 %v638, 0.0
    %v671 = vsub.f32 %v224, %v415
    %v672 = vsub.f32 %v227, %v416
    %v673 = vsub.f32 %v232, %v417
    %v674 = vsub.f32 %v235, %v418
    %v675 = vsub.f32 %v240, %v419
    %v676 = vsub.f32 %v243, %v420
    %v677 = vsub.f32 %v248, %v421
    %v678 = vsub.f32 %v251, %v422
    %v679 = vsub.f32 %v256, %v423
    %v680 = vsub.f32 %v259, %v424
    %v681 = vsub.f32 %v264, %v425
    %v682 = vsub.f32 %v267, %v426
    %v683 = vsub.f32 %v272, %v427
    %v684 = vsub.f32 %v275, %v428
    %v685 = vsub.f32 %v280, %v429
    %v686 = vsub.f32 %v283, %v430
    %v687 = vsub.f32 %v288, %v431
    %v688 = vsub.f32 %v291, %v432
    %v689 = vsub.f32 %v296, %v433
    %v690 = vsub.f32 %v299, %v434
    %v691 = vsub.f32 %v304, %v435
    %v692 = vsub.f32 %v307, %v436
    %v693 = vsub.f32 %v312, %v437
    %v694 = vsub.f32 %v315, %v438
    %v695 = vsub.f32 %v320, %v439
    %v696 = vsub.f32 %v323, %v440
    %v697 = vsub.f32 %v328, %v441
    %v698 = vsub.f32 %v331, %v442
    %v699 = vsub.f32 %v336, %v443
    %v700 = vsub.f32 %v339, %v444
    %v701 = vsub.f32 %v344, %v445
    %v702 = vsub.f32 %v347, %v446
    %v703 = vadd.f32 %v639, 1e-05
    %v704 = vadd.f32 %v640, 1e-05
    %v705 = vadd.f32 %v641, 1e-05
    %v706 = vadd.f32 %v642, 1e-05
    %v707 = vadd.f32 %v643, 1e-05
    %v708 = vadd.f32 %v644, 1e-05
    %v709 = vadd.f32 %v645, 1e-05
    %v710 = vadd.f32 %v646, 1e-05
    %v711 = vadd.f32 %v647, 1e-05
    %v712 = vadd.f32 %v648, 1e-05
    %v713 = vadd.f32 %v649, 1e-05
    %v714 = vadd.f32 %v650, 1e-05
    %v715 = vadd.f32 %v651, 1e-05
    %v716 = vadd.f32 %v652, 1e-05
    %v717 = vadd.f32 %v653, 1e-05
    %v718 = vadd.f32 %v654, 1e-05
    %v719 = vadd.f32 %v655, 1e-05
    %v720 = vadd.f32 %v656, 1e-05
    %v721 = vadd.f32 %v657, 1e-05
    %v722 = vadd.f32 %v658, 1e-05
    %v723 = vadd.f32 %v659, 1e-05
    %v724 = vadd.f32 %v660, 1e-05
    %v725 = vadd.f32 %v661, 1e-05
    %v726 = vadd.f32 %v662, 1e-05
    %v727 = vadd.f32 %v663, 1e-05
    %v728 = vadd.f32 %v664, 1e-05
    %v729 = vadd.f32 %v665, 1e-05
    %v730 = vadd.f32 %v666, 1e-05
    %v731 = vadd.f32 %v667, 1e-05
    %v732 = vadd.f32 %v668, 1e-05
    %v733 = vadd.f32 %v669, 1e-05
    %v734 = vadd.f32 %v670, 1e-05
    %v735 = vrsqrt.pop %v703
    %v736 = vrsqrt.pop %v704
    %v737 = vrsqrt.pop %v705
    %v738 = vrsqrt.pop %v706
    %v739 = vrsqrt.pop %v707
    %v740 = vrsqrt.pop %v708
    %v741 = vrsqrt.pop %v709
    %v742 = vrsqrt.pop %v710
    %v743 = vrsqrt.pop %v711
    %v744 = vrsqrt.pop %v712
    %v745 = vrsqrt.pop %v713
    %v746 = vrsqrt.pop %v714
    %v747 = vrsqrt.pop %v715
    %v748 = vrsqrt.pop %v716
    %v749 = vrsqrt.pop %v717
    %v750 = vrsqrt.pop %v718
    %v751 = vrsqrt.pop %v719
    %v752 = vrsqrt.pop %v720
    %v753 = vrsqrt.pop %v721
    %v754 = vrsqrt.pop %v722
    %v755 = vrsqrt.pop %v723
    %v756 = vrsqrt.pop %v724
    %v757 = vrsqrt.pop %v725
    %v758 = vrsqrt.pop %v726
    %v759 = vrsqrt.pop %v727
    %v760 = vrsqrt.pop %v728
    %v761 = vrsqrt.pop %v729
    %v762 = vrsqrt.pop %v730
    %v763 = vrsqrt.pop %v731
    %v764 = vrsqrt.pop %v732
    %v765 = vrsqrt.pop %v733
    %v766 = vrsqrt.pop %v734
    %v767 = vmul.f32 %v671, %v735
    %v768 = vmul.f32 %v672, %v736
    %v769 = vmul.f32 %v673, %v737
    %v770 = vmul.f32 %v674, %v738
    %v771 = vmul.f32 %v675, %v739
    %v772 = vmul.f32 %v676, %v740
    %v773 = vmul.f32 %v677, %v741
    %v774 = vmul.f32 %v678, %v742
    %v775 = vmul.f32 %v679, %v743
    %v776 = vmul.f32 %v680, %v744
    %v777 = vmul.f32 %v681, %v745
    %v778 = vmul.f32 %v682, %v746
    %v779 = vmul.f32 %v683, %v747
    %v780 = vmul.f32 %v684, %v748
    %v781 = vmul.f32 %v685, %v749
    %v782 = vmul.f32 %v686, %v750
    %v783 = vmul.f32 %v687, %v751
    %v784 = vmul.f32 %v688, %v752
    %v785 = vmul.f32 %v689, %v753
    %v786 = vmul.f32 %v690, %v754
    %v787 = vmul.f32 %v691, %v755
    %v788 = vmul.f32 %v692, %v756
    %v789 = vmul.f32 %v693, %v757
    %v790 = vmul.f32 %v694, %v758
    %v791 = vmul.f32 %v695, %v759
    %v792 = vmul.f32 %v696, %v760
    %v793 = vmul.f32 %v697, %v761
    %v794 = vmul.f32 %v698, %v762
    %v795 = vmul.f32 %v699, %v763
    %v796 = vmul.f32 %v700, %v764
    %v797 = vmul.f32 %v701, %v765
    %v798 = vmul.f32 %v702, %v766
    %v799 = vlaneseq
    %v800 = vshrl.u32 %v799, 7
    %v801 = vsub.s32 1, %v800
    %v802 = vrot.slane %v72, %v801
    %v803 = vmul.f32 %v767, %v802
    %v804 = vmul.f32 %v768, %v802
    %v805 = vmul.f32 %v769, %v802
    %v806 = vmul.f32 %v770, %v802
    %v807 = vmul.f32 %v771, %v802
    %v808 = vmul.f32 %v772, %v802
    %v809 = vmul.f32 %v773, %v802
    %v810 = vmul.f32 %v774, %v802
    %v811 = vmul.f32 %v775, %v802
    %v812 = vmul.f32 %v776, %v802
    %v813 = vmul.f32 %v777, %v802
    %v814 = vmul.f32 %v778, %v802
    %v815 = vmul.f32 %v779, %v802
    %v816 = vmul.f32 %v780, %v802
    %v817 = vmul.f32 %v781, %v802
    %v818 = vmul.f32 %v782, %v802
    %v819 = vmul.f32 %v783, %v802
    %v820 = vmul.f32 %v784, %v802
    %v821 = vmul.f32 %v785, %v802
    %v822 = vmul.f32 %v786, %v802
    %v823 = vmul.f32 %v787, %v802
    %v824 = vmul.f32 %v788, %v802
    %v825 = vmul.f32 %v789, %v802
    %v826 = vmul.f32 %v790, %v802
    %v827 = vmul.f32 %v791, %v802
    %v828 = vmul.f32 %v792, %v802
    %v829 = vmul.f32 %v793, %v802
    %v830 = vmul.f32 %v794, %v802
    %v831 = vmul.f32 %v795, %v802
    %v832 = vmul.f32 %v796, %v802
    %v833 = vmul.f32 %v797, %v802
    %v834 = vmul.f32 %v798, %v802
    %v835 = vlaneseq
    %v836 = vshrl.u32 %v835, 7
    %v837 = vsub.s32 2, %v836
    %v838 = vrot.slane %v72, %v837
    %v839 = vadd.f32 %v803, %v838
    %v840 = vadd.f32 %v804, %v838
    %v841 = vadd.f32 %v805, %v838
    %v842 = vadd.f32 %v806, %v838
    %v843 = vadd.f32 %v807, %v838
    %v844 = vadd.f32 %v808, %v838
    %v845 = vadd.f32 %v809, %v838
    %v846 = vadd.f32 %v810, %v838
    %v847 = vadd.f32 %v811, %v838
    %v848 = vadd.f32 %v812, %v838
    %v849 = vadd.f32 %v813, %v838
    %v850 = vadd.f32 %v814, %v838
    %v851 = vadd.f32 %v815, %v838
    %v852 = vadd.f32 %v816, %v838
    %v853 = vadd.f32 %v817, %v838
    %v854 = vadd.f32 %v818, %v838
    %v855 = vadd.f32 %v819, %v838
    %v856 = vadd.f32 %v820, %v838
    %v857 = vadd.f32 %v821, %v838
    %v858 = vadd.f32 %v822, %v838
    %v859 = vadd.f32 %v823, %v838
    %v860 = vadd.f32 %v824, %v838
    %v861 = vadd.f32 %v825, %v838
    %v862 = vadd.f32 %v826, %v838
    %v863 = vadd.f32 %v827, %v838
    %v864 = vadd.f32 %v828, %v838
    %v865 = vadd.f32 %v829, %v838
    %v866 = vadd.f32 %v830, %v838
    %v867 = vadd.f32 %v831, %v838
    %v868 = vadd.f32 %v832, %v838
    %v869 = vadd.f32 %v833, %v838
    %v870 = vadd.f32 %v834, %v838
    %v871 = vmax.f32 %v839, 0.0
    %v872 = vmax.f32 %v840, 0.0
    %v873 = vmax.f32 %v841, 0.0
    %v874 = vmax.f32 %v842, 0.0
    %v875 = vmax.f32 %v843, 0.0
    %v876 = vmax.f32 %v844, 0.0
    %v877 = vmax.f32 %v845, 0.0
    %v878 = vmax.f32 %v846, 0.0
    %v879 = vmax.f32 %v847, 0.0
    %v880 = vmax.f32 %v848, 0.0
    %v881 = vmax.f32 %v849, 0.0
    %v882 = vmax.f32 %v850, 0.0
    %v883 = vmax.f32 %v851, 0.0
    %v884 = vmax.f32 %v852, 0.0
    %v885 = vmax.f32 %v853, 0.0
    %v886 = vmax.f32 %v854, 0.0
    %v887 = vmax.f32 %v855, 0.0
    %v888 = vmax.f32 %v856, 0.0
    %v889 = vmax.f32 %v857, 0.0
    %v890 = vmax.f32 %v858, 0.0
    %v891 = vmax.f32 %v859, 0.0
    %v892 = vmax.f32 %v860, 0.0
    %v893 = vmax.f32 %v861, 0.0
    %v894 = vmax.f32 %v862, 0.0
    %v895 = vmax.f32 %v863, 0.0
    %v896 = vmax.f32 %v864, 0.0
    %v897 = vmax.f32 %v865, 0.0
    %v898 = vmax.f32 %v866, 0.0
    %v899 = vmax.f32 %v867, 0.0
    %v900 = vmax.f32 %v868, 0.0
    %v901 = vmax.f32 %v869, 0.0
    %v902 = vmax.f32 %v870, 0.0
    %v903 = vpack.c.bf16 %v872, %v871
    %v904 = vpack.c.bf16 %v874, %v873
    %v905 = vpack.c.bf16 %v876, %v875
    %v906 = vpack.c.bf16 %v878, %v877
    %v907 = vpack.c.bf16 %v880, %v879
    %v908 = vpack.c.bf16 %v882, %v881
    %v909 = vpack.c.bf16 %v884, %v883
    %v910 = vpack.c.bf16 %v886, %v885
    %v911 = vpack.c.bf16 %v888, %v887
    %v912 = vpack.c.bf16 %v890, %v889
    %v913 = vpack.c.bf16 %v892, %v891
    %v914 = vpack.c.bf16 %v894, %v893
    %v915 = vpack.c.bf16 %v896, %v895
    %v916 = vpack.c.bf16 %v898, %v897
    %v917 = vpack.c.bf16 %v900, %v899
    %v918 = vpack.c.bf16 %v902, %v901
    %v919 = vld [vmem:[#allocation8] sm:$0xf]
    %v920 = vld [vmem:[#allocation8 + $0x4] sm:$0xf]
    %v921 = vld [vmem:[#allocation8 + $0x8] sm:$0xf]
    %v922 = vld [vmem:[#allocation8 + $0xc] sm:$0xf]
    %v923 = vld [vmem:[#allocation8 + $0x10] sm:$0xf]
    %v924 = vld [vmem:[#allocation8 + $0x14] sm:$0xf]
    %v925 = vld [vmem:[#allocation8 + $0x18] sm:$0xf]
    %v926 = vld [vmem:[#allocation8 + $0x1c] sm:$0xf]
    %v927 = vld [vmem:[#allocation8 + $0x20] sm:$0xf]
    %v928 = vld [vmem:[#allocation8 + $0x24] sm:$0xf]
    %v929 = vld [vmem:[#allocation8 + $0x28] sm:$0xf]
    %v930 = vld [vmem:[#allocation8 + $0x2c] sm:$0xf]
    %v931 = vld [vmem:[#allocation8 + $0x30] sm:$0xf]
    %v932 = vld [vmem:[#allocation8 + $0x34] sm:$0xf]
    %v933 = vld [vmem:[#allocation8 + $0x38] sm:$0xf]
    %v934 = vld [vmem:[#allocation8 + $0x3c] sm:$0xf]
    %v935 = vlaneseq
    %v936 = vshrl.u32 %v935, 7
    %v937 = vsub.s32 3, %v936
    %v938 = vrot.slane %v72, %v937
    %v955 = vunpack.c.l.b16 %v919
    %v956 = vunpack.c.l.b16 %v920
    %v957 = vunpack.c.l.b16 %v921
    %v958 = vunpack.c.l.b16 %v922
    %v959 = vunpack.c.l.b16 %v923
    %v960 = vunpack.c.l.b16 %v924
    %v961 = vunpack.c.l.b16 %v925
    %v962 = vunpack.c.l.b16 %v926
    %v963 = vunpack.c.l.b16 %v927
    %v964 = vunpack.c.l.b16 %v928
    %v965 = vunpack.c.l.b16 %v929
    %v966 = vunpack.c.l.b16 %v930
    %v967 = vunpack.c.l.b16 %v931
    %v968 = vunpack.c.l.b16 %v932
    %v969 = vunpack.c.l.b16 %v933
    %v970 = vunpack.c.l.b16 %v934
    %v971 = vpack.c.b16 %v956, %v955
    %v972 = vpack.c.b16 %v958, %v957
    %v973 = vpack.c.b16 %v960, %v959
    %v974 = vpack.c.b16 %v962, %v961
    %v975 = vpack.c.b16 %v964, %v963
    %v976 = vpack.c.b16 %v966, %v965
    %v977 = vpack.c.b16 %v968, %v967
    %v978 = vpack.c.b16 %v970, %v969
    %987 = vmatprep.subr.bf16.mxu0 0
    %988 = vmatpush1.bf16.msra.mxu0 %v971
    %989 = vmatprep.subr.bf16.mxu0 0
    %990 = vmatpush1.bf16.msra.mxu0 %v972
    %991 = vmatprep.subr.bf16.mxu0 0
    %992 = vmatpush1.bf16.msra.mxu0 %v973
    %993 = vmatprep.subr.bf16.mxu0 0
    %994 = vmatpush1.bf16.msra.mxu0 %v974
    %995 = vmatprep.subr.bf16.mxu0 0
    %996 = vmatpush1.bf16.msra.mxu0 %v975
    %997 = vmatprep.subr.bf16.mxu0 0
    %998 = vmatpush1.bf16.msra.mxu0 %v976
    %999 = vmatprep.subr.bf16.mxu0 0
    %1000 = vmatpush1.bf16.msra.mxu0 %v977
    %1001 = vmatprep.subr.bf16.mxu0 0
    %1002 = vmatpush1.bf16.msra.mxu0 %v978
    %1003 = vmatprep.subr.bf16.mxu0 0
    %1004 = vmatpush1.bf16.msra.mxu0 0
    %1005 = vmatprep.subr.bf16.mxu0 0
    %1006 = vmatpush1.bf16.msra.mxu0 0
    %1007 = vmatprep.subr.bf16.mxu0 0
    %1008 = vmatpush1.bf16.msra.mxu0 0
    %1009 = vmatprep.subr.bf16.mxu0 0
    %1010 = vmatpush1.bf16.msra.mxu0 0
    %1011 = vmatprep.subr.bf16.mxu0 0
    %1012 = vmatpush1.bf16.msra.mxu0 0
    %1013 = vmatprep.subr.bf16.mxu0 0
    %1014 = vmatpush1.bf16.msra.mxu0 0
    %1015 = vmatprep.subr.bf16.mxu0 0
    %1016 = vmatpush1.bf16.msra.mxu0 0
    %1017 = vmatprep.subr.bf16.mxu0 0
    %1018 = vmatpush1.bf16.msra.mxu0 0
    %1019 = vmatprep.mubr.bf16.mxu0 0
    %1020 = vmatmul.mubr.bf16.gmra.mrb[0].mxu0 %v903
    %v1021 = vpop.f32.mrb[0].mxu0
    %v1022 = vadd.f32 %v938, %v1021
    %v1023 = vpop.f32.mrb[0].mxu0
    %v1024 = vpop.f32.mrb[0].mxu0
    %v1025 = vadd.f32 %v938, %v1024
    %v1026 = vpop.f32.mrb[0].mxu0
    %1027 = vmatprep.mubr.bf16.mxu0 0
    %1028 = vmatmul.mubr.bf16.gmra.mrb[0].mxu0 %v904
    %v1029 = vpop.f32.mrb[0].mxu0
    %v1030 = vadd.f32 %v938, %v1029
    %v1031 = vpop.f32.mrb[0].mxu0
    %v1032 = vpop.f32.mrb[0].mxu0
    %v1033 = vadd.f32 %v938, %v1032
    %v1034 = vpop.f32.mrb[0].mxu0
    %1035 = vmatprep.mubr.bf16.mxu0 0
    %1036 = vmatmul.mubr.bf16.gmra.mrb[0].mxu0 %v905
    %v1037 = vpop.f32.mrb[0].mxu0
    %v1038 = vadd.f32 %v938, %v1037
    %v1039 = vpop.f32.mrb[0].mxu0
    %v1040 = vpop.f32.mrb[0].mxu0
    %v1041 = vadd.f32 %v938, %v1040
    %v1042 = vpop.f32.mrb[0].mxu0
    %1043 = vmatprep.mubr.bf16.mxu0 0
    %1044 = vmatmul.mubr.bf16.gmra.mrb[0].mxu0 %v906
    %v1045 = vpop.f32.mrb[0].mxu0
    %v1046 = vadd.f32 %v938, %v1045
    %v1047 = vpop.f32.mrb[0].mxu0
    %v1048 = vpop.f32.mrb[0].mxu0
    %v1049 = vadd.f32 %v938, %v1048
    %v1050 = vpop.f32.mrb[0].mxu0
    %1051 = vmatprep.mubr.bf16.mxu0 0
    %1052 = vmatmul.mubr.bf16.gmra.mrb[0].mxu0 %v907
    %v1053 = vpop.f32.mrb[0].mxu0
    %v1054 = vadd.f32 %v938, %v1053
    %v1055 = vpop.f32.mrb[0].mxu0
    %v1056 = vpop.f32.mrb[0].mxu0
    %v1057 = vadd.f32 %v938, %v1056
    %v1058 = vpop.f32.mrb[0].mxu0
    %1059 = vmatprep.mubr.bf16.mxu0 0
    %1060 = vmatmul.mubr.bf16.gmra.mrb[0].mxu0 %v908
    %v1061 = vpop.f32.mrb[0].mxu0
    %v1062 = vadd.f32 %v938, %v1061
    %v1063 = vpop.f32.mrb[0].mxu0
    %v1064 = vpop.f32.mrb[0].mxu0
    %v1065 = vadd.f32 %v938, %v1064
    %v1066 = vpop.f32.mrb[0].mxu0
    %1067 = vmatprep.mubr.bf16.mxu0 0
    %1068 = vmatmul.mubr.bf16.gmra.mrb[0].mxu0 %v909
    %v1069 = vpop.f32.mrb[0].mxu0
    %v1070 = vadd.f32 %v938, %v1069
    %v1071 = vpop.f32.mrb[0].mxu0
    %v1072 = vpop.f32.mrb[0].mxu0
    %v1073 = vadd.f32 %v938, %v1072
    %v1074 = vpop.f32.mrb[0].mxu0
    %1075 = vmatprep.mubr.bf16.mxu0 0
    %1076 = vmatmul.mubr.bf16.gmra.mrb[0].mxu0 %v910
    %v1077 = vpop.f32.mrb[0].mxu0
    %v1078 = vadd.f32 %v938, %v1077
    %v1079 = vpop.f32.mrb[0].mxu0
    %v1080 = vpop.f32.mrb[0].mxu0
    %v1081 = vadd.f32 %v938, %v1080
    %v1082 = vpop.f32.mrb[0].mxu0
    %1083 = vmatprep.mubr.bf16.mxu0 0
    %1084 = vmatmul.mubr.bf16.gmra.mrb[0].mxu0 %v911
    %v1085 = vpop.f32.mrb[0].mxu0
    %v1086 = vadd.f32 %v938, %v1085
    %v1087 = vpop.f32.mrb[0].mxu0
    %v1088 = vpop.f32.mrb[0].mxu0
    %v1089 = vadd.f32 %v938, %v1088
    %v1090 = vpop.f32.mrb[0].mxu0
    %1091 = vmatprep.mubr.bf16.mxu0 0
    %1092 = vmatmul.mubr.bf16.gmra.mrb[0].mxu0 %v912
    %v1093 = vpop.f32.mrb[0].mxu0
    %v1094 = vadd.f32 %v938, %v1093
    %v1095 = vpop.f32.mrb[0].mxu0
    %v1096 = vpop.f32.mrb[0].mxu0
    %v1097 = vadd.f32 %v938, %v1096
    %v1098 = vpop.f32.mrb[0].mxu0
    %1099 = vmatprep.mubr.bf16.mxu0 0
    %1100 = vmatmul.mubr.bf16.gmra.mrb[0].mxu0 %v913
    %v1101 = vpop.f32.mrb[0].mxu0
    %v1102 = vadd.f32 %v938, %v1101
    %v1103 = vpop.f32.mrb[0].mxu0
    %v1104 = vpop.f32.mrb[0].mxu0
    %v1105 = vadd.f32 %v938, %v1104
    %v1106 = vpop.f32.mrb[0].mxu0
    %1107 = vmatprep.mubr.bf16.mxu0 0
    %1108 = vmatmul.mubr.bf16.gmra.mrb[0].mxu0 %v914
    %v1109 = vpop.f32.mrb[0].mxu0
    %v1110 = vadd.f32 %v938, %v1109
    %v1111 = vpop.f32.mrb[0].mxu0
    %v1112 = vpop.f32.mrb[0].mxu0
    %v1113 = vadd.f32 %v938, %v1112
    %v1114 = vpop.f32.mrb[0].mxu0
    %1115 = vmatprep.mubr.bf16.mxu0 0
    %1116 = vmatmul.mubr.bf16.gmra.mrb[0].mxu0 %v915
    %v1117 = vpop.f32.mrb[0].mxu0
    %v1118 = vadd.f32 %v938, %v1117
    %v1119 = vpop.f32.mrb[0].mxu0
    %v1120 = vpop.f32.mrb[0].mxu0
    %v1121 = vadd.f32 %v938, %v1120
    %v1122 = vpop.f32.mrb[0].mxu0
    %1123 = vmatprep.mubr.bf16.mxu0 0
    %1124 = vmatmul.mubr.bf16.gmra.mrb[0].mxu0 %v916
    %v1125 = vpop.f32.mrb[0].mxu0
    %v1126 = vadd.f32 %v938, %v1125
    %v1127 = vpop.f32.mrb[0].mxu0
    %v1128 = vpop.f32.mrb[0].mxu0
    %v1129 = vadd.f32 %v938, %v1128
    %v1130 = vpop.f32.mrb[0].mxu0
    %1131 = vmatprep.mubr.bf16.mxu0 0
    %1132 = vmatmul.mubr.bf16.gmra.mrb[0].mxu0 %v917
    %v1133 = vpop.f32.mrb[0].mxu0
    %v1134 = vadd.f32 %v938, %v1133
    %v1135 = vpop.f32.mrb[0].mxu0
    %v1136 = vpop.f32.mrb[0].mxu0
    %v1137 = vadd.f32 %v938, %v1136
    %v1138 = vpop.f32.mrb[0].mxu0
    %1139 = vmatprep.mubr.bf16.mxu0 0
    %1140 = vmatmul.mubr.bf16.gmra.mrb[0].mxu0 %v918
    %v1141 = vpop.f32.mrb[0].mxu0
    %v1142 = vadd.f32 %v938, %v1141
    %v1143 = vpop.f32.mrb[0].mxu0
    %v1144 = vpop.f32.mrb[0].mxu0
    %v1145 = vadd.f32 %v938, %v1144
    %v1146 = vpop.f32.mrb[0].mxu0
    %1147 = vdwg.mxu0
    %1148 = vst [vmem:[#allocation10] sm:$0xff] %v1022
    %1149 = vst [vmem:[#allocation10 + $0x8] sm:$0xff] %v1025
    %1150 = vst [vmem:[#allocation10 + $0x10] sm:$0xff] %v1030
    %1151 = vst [vmem:[#allocation10 + $0x18] sm:$0xff] %v1033
    %1152 = vst [vmem:[#allocation10 + $0x20] sm:$0xff] %v1038
    %1153 = vst [vmem:[#allocation10 + $0x28] sm:$0xff] %v1041
    %1154 = vst [vmem:[#allocation10 + $0x30] sm:$0xff] %v1046
    %1155 = vst [vmem:[#allocation10 + $0x38] sm:$0xff] %v1049
    %1156 = vst [vmem:[#allocation10 + $0x40] sm:$0xff] %v1054
    %1157 = vst [vmem:[#allocation10 + $0x48] sm:$0xff] %v1057
    %1158 = vst [vmem:[#allocation10 + $0x50] sm:$0xff] %v1062
    %1159 = vst [vmem:[#allocation10 + $0x58] sm:$0xff] %v1065
    %1160 = vst [vmem:[#allocation10 + $0x60] sm:$0xff] %v1070
    %1161 = vst [vmem:[#allocation10 + $0x68] sm:$0xff] %v1073
    %1162 = vst [vmem:[#allocation10 + $0x70] sm:$0xff] %v1078
    %1163 = vst [vmem:[#allocation10 + $0x78] sm:$0xff] %v1081
    %1164 = vst [vmem:[#allocation10 + $0x80] sm:$0xff] %v1086
    %1165 = vst [vmem:[#allocation10 + $0x88] sm:$0xff] %v1089
    %1166 = vst [vmem:[#allocation10 + $0x90] sm:$0xff] %v1094
    %1167 = vst [vmem:[#allocation10 + $0x98] sm:$0xff] %v1097
    %1168 = vst [vmem:[#allocation10 + $0xa0] sm:$0xff] %v1102
    %1169 = vst [vmem:[#allocation10 + $0xa8] sm:$0xff] %v1105
    %1170 = vst [vmem:[#allocation10 + $0xb0] sm:$0xff] %v1110
    %1171 = vst [vmem:[#allocation10 + $0xb8] sm:$0xff] %v1113
    %1172 = vst [vmem:[#allocation10 + $0xc0] sm:$0xff] %v1118
    %1173 = vst [vmem:[#allocation10 + $0xc8] sm:$0xff] %v1121
    %1174 = vst [vmem:[#allocation10 + $0xd0] sm:$0xff] %v1126
    %1175 = vst [vmem:[#allocation10 + $0xd8] sm:$0xff] %v1129
    %1176 = vst [vmem:[#allocation10 + $0xe0] sm:$0xff] %v1134
    %1177 = vst [vmem:[#allocation10 + $0xe8] sm:$0xff] %v1137
    %1178 = vst [vmem:[#allocation10 + $0xf0] sm:$0xff] %v1142
    %1179 = vst [vmem:[#allocation10 + $0xf8] sm:$0xff] %v1145
    // Predicated region
    $region34: #{tpu_custom_call.1} parent=1 // pred_check
      _
    $region35: #{tpu_custom_call.1} parent=1 // pred_check_branch
      %1181 = sbr.rel (0) target = $region37
    $region36: #{tpu_custom_call.1} parent=1 // pred_region
      %s1183 = ssub.s32 4096, 4096
      %1184 = vsyncadd [#allocation4], %s1183
      %s1185 = sshll.u32 [#allocation10], 4
      %s1186 = int_to_ptr.vmem [resolvable:$true] %s1185
      %1191 = dma.vmem_to_hbm [thread:$0]  %s1186, 4096, %s4, [#allocation4], 128, 128, 8
    $region37: #{tpu_custom_call.1} parent=1 // pred_fallthru
      _
    // Predicated region
    $region38: #{tpu_custom_call.1} parent=1 // pred_check
      _
    $region39: #{tpu_custom_call.1} parent=1 // pred_check_branch
      %1193 = sbr.rel (0) target = $region41
    $region40: #{tpu_custom_call.1} parent=1 // pred_region
      %1194 = dma.done [#allocation4], 4096
    $region41: #{tpu_custom_call.1} parent=1 // pred_fallthru
      _
    %1195 = vsyncpa [#allocation3], 1
    %1196 = vsyncpa [#allocation6], 1
    %1197 = vsyncpa [#allocation9], 1
    %1198 = vsyncpa [#allocation4], 1

</llo_original>
